<compile_context>
chip_gen: v6e
topology: v6e:2x2x1
jax: 0.10.0
libtpu: 0.0.40
codegen_flags: <defaults>
</compile_context>

<pallas_src>
import functools

import numpy as np

import jax
import jax.numpy as jnp
from jax.experimental import pallas as pl
from jax.experimental.pallas import tpu as pltpu


def cnn_kernel(x_ref, w_all_ref, b_fused_ref, mask_ref, wfc_ref, bfc_ref,
               out_ref, *, seq_len, k_max, conv_channels):
    L = seq_len
    C = conv_channels
    M = x_ref.shape[0]                       # bt * L flattened (batch, time) rows
    bt = M // L

    # One wide MXU matmul: (M, E) @ (E, K_max*C) -> all tap contributions.
    taps = jnp.dot(x_ref[...], w_all_ref[...],
                   preferred_element_type=jnp.float32)

    # acc[r] = sum_k taps_k[r - k]  (weights are stored time-reversed, so for a
    # valid row at in-sequence time t this equals the PyTorch conv_i output at
    # position t - (K_i - 1)).  Shifts go through the XLU (sublane roll);
    # wrapped / cross-sequence rows are zeroed by the mask below.
    acc = taps[:, 0:C]
    for k in range(1, k_max):
        acc = acc + pltpu.roll(taps[:, k * C:(k + 1) * C], shift=k, axis=0)
    acc = acc + b_fused_ref[...]             # fused (b_in-folded + conv) bias, once

    # ReLU, then zero invalid rows (t < K_i - 1 or padded time).  Safe because
    # masking happens after ReLU, so zeros never win the max-pool.
    relu = jnp.maximum(acc, 0.0) * mask_ref[...]

    # Global max-pool over time -> (bt, C); columns already follow the
    # concatenation order of the four filter groups (no lane-level concat).
    pooled = jnp.max(relu.reshape(bt, L, C), axis=1)

    # Final fc; dropout is identity at inference.
    # (O is tiny here -> masked vst; pad O to 128 if this is reused at scale.)
    out = jnp.dot(pooled.astype(wfc_ref.dtype), wfc_ref[...],
                  preferred_element_type=jnp.float32) + bfc_ref[...]
    out_ref[0] = out.astype(out_ref.dtype)


def fuse_params(params, filter_sizes, n_filters):
    """Fold fc_input into the conv bank and pack all taps into one wide weight.

    Returns:
      w_all:   (E, K_max*C) -- fused tap k (time-reversed) occupies columns
               [k*C, (k+1)*C); filter-group i occupies [i*F, (i+1)*F) inside it.
      b_fused: (1, C)       -- b_in @ sum_j w_i[j] + b_i per group.
    """
    w_in, b_in = params["w_in"], params["b_in"]
    E = w_in.shape[0]
    F = n_filters
    K_max = max(filter_sizes)

    cols = []
    for k in range(K_max):
        groups = []
        for i, K in enumerate(filter_sizes):
            wi = params[f"w{i}"]                      # (K, E, F)
            if k < K:                                 # fused tap k hits x[t - k]
                groups.append(w_in @ wi[K - 1 - k])   # (E, F)
            else:
                groups.append(jnp.zeros((E, F), jnp.float32))
        cols.append(jnp.concatenate(groups, axis=1))  # (E, C)
    w_all = jnp.concatenate(cols, axis=1)             # (E, K_max*C)

    b_fused = jnp.concatenate(
        [b_in @ jnp.sum(params[f"w{i}"], axis=0) + params[f"b{i}"]
         for i in range(len(filter_sizes))], axis=1)  # (1, C)
    return w_all, b_fused


def build_mask(bt, seq_pad, seq_len, filter_sizes, n_filters):
    """(bt*seq_pad, C) f32 0/1 validity mask.

    Row r (in-sequence time t = r % seq_pad), filter-group i is valid iff
    K_i - 1 <= t < seq_len (original, unpadded length).
    """
    thresh = np.repeat(np.asarray(filter_sizes, np.int32) - 1, n_filters)   # (C,)
    t = np.arange(bt * seq_pad, dtype=np.int32) % seq_pad                   # (M,)
    valid = (t[:, None] >= thresh[None, :]) & (t[:, None] < seq_len)
    return jnp.asarray(valid.astype(np.float32))


def _pick_num_tiles(batch, seq_pad, emb_dim, conv_channels, k_max, x_itemsize):
    """VMEM-budgeted, chip-aware grid size (review: don't hardcode 2 steps)."""
    bytes_per_row = (2 * emb_dim * x_itemsize                  # x tile, double-buffered
                     + (k_max + 4) * conv_channels * 4         # taps + acc/relu + mask
                     + 4 * emb_dim)                            # slack
    budget = 24 << 20                 # stay under the 32 MiB default scoped VMEM
    max_bt = max(1, budget // max(1, bytes_per_row * seq_pad))
    n = -(-batch // max_bt)           # ceil: 1 step for small inputs
    if n > 1:
        try:                          # 2-TC chips: even split, >=2 iters per core
            if "v7" in jax.devices()[0].device_kind.lower():
                n = max(4, n + (n & 1))
        except Exception:
            pass
    return min(n, batch)


def cnn_forward(x, params, filter_sizes, *, num_batch_tiles=None,
                compute_dtype=jnp.float32):
    B, L, E = x.shape
    F = params["w0"].shape[2]
    C = len(filter_sizes) * F
    O = params["wfc"].shape[1]
    K_max = max(filter_sizes)

    # Sublane-align the sequence length so the (bt, L, C) reshape / time
    # max-pool never crosses (8,128) tile boundaries.
    L_pad = -(-L // 8) * 8

    itemsize = jnp.dtype(compute_dtype).itemsize
    if num_batch_tiles is None:
        n_tiles = _pick_num_tiles(B, L_pad, E, C, K_max, itemsize)
    else:
        n_tiles = max(1, min(num_batch_tiles, B))
    bt = -(-B // n_tiles)
    B_pad = n_tiles * bt
    M = bt * L_pad

    if B_pad != B or L_pad != L:
        x = jnp.pad(x, ((0, B_pad - B), (0, L_pad - L), (0, 0)))
    x_flat = x.reshape(B_pad * L_pad, E)     # flattened rows for wide matmuls

    w_all, b_fused = fuse_params(params, filter_sizes, F)
    mask = build_mask(bt, L_pad, L, filter_sizes, F)
    wfc, bfc = params["wfc"], params["bfc"]

    if compute_dtype != jnp.float32:
        # Pre-cast in the wrapper (halves x DMA, no per-step VPU casts);
        # biases / mask / accumulation stay f32.
        x_flat = x_flat.astype(compute_dtype)
        w_all = w_all.astype(compute_dtype)
        wfc = wfc.astype(compute_dtype)

    kernel = functools.partial(cnn_kernel, seq_len=L_pad, k_max=K_max,
                               conv_channels=C)

    # Weights/mask: constant block index -> resident across the grid.
    # (Single-buffering them via pipeline_mode only matters at much larger E.)
    full = lambda shape: pl.BlockSpec(shape, lambda b: (0,) * len(shape))

    out = pl.pallas_call(
        kernel,
        out_shape=jax.ShapeDtypeStruct((n_tiles, bt, O), jnp.float32),
        grid=(n_tiles,),
        in_specs=[
            pl.BlockSpec((M, E), lambda b: (b, 0)),   # per-tile x rows
            full((E, K_max * C)),                     # fused conv bank (one wide matmul)
            full((1, C)),                             # fused bias
            full((M, C)),                             # precomputed validity mask
            full((C, O)), full((1, O)),               # final fc
        ],
        out_specs=pl.BlockSpec((1, bt, O), lambda b: (b, 0, 0)),
        compiler_params=pltpu.CompilerParams(
            dimension_semantics=("parallel",)),
    )(x_flat, w_all, b_fused, mask, wfc, bfc)
    return out.reshape(B_pad, O)[:B]


def reference_forward(x, params, filter_sizes):
    """Pure-JAX reference mirroring the PyTorch forward (eval mode), unfused."""
    emb = jnp.einsum("ble,ef->blf", x, params["w_in"]) + params["b_in"]
    L = emb.shape[1]
    pooled = []
    for i, K in enumerate(filter_sizes):
        w = params[f"w{i}"]          # (K, E, F)
        b = params[f"b{i}"]          # (1, F)
        t_out = L - K + 1
        acc = jnp.zeros((emb.shape[0], t_out, w.shape[2]), jnp.float32) + b
        for k in range(K):
            acc = acc + jnp.einsum("ble,ef->blf", emb[:, k:k + t_out, :], w[k])
        pooled.append(jnp.max(jnp.maximum(acc, 0.0), axis=1))   # (B, F)
    cat = jnp.concatenate(pooled, axis=1)
    return cat @ params["wfc"] + params["bfc"]


def init_params(key, embedding_dim, n_filters, filter_sizes, output_dim):
    keys = jax.random.split(key, 16)
    p = {}
    s = 0.05
    p["w_in"] = s * jax.random.normal(keys[0], (embedding_dim, embedding_dim), jnp.float32)
    p["b_in"] = s * jax.random.normal(keys[1], (1, embedding_dim), jnp.float32)
    for i, K in enumerate(filter_sizes):
        # torch Conv1d weight is (F, E, K); stored here as (K, E, F)
        p[f"w{i}"] = s * jax.random.normal(keys[2 + 2 * i],
                                           (K, embedding_dim, n_filters), jnp.float32)
        p[f"b{i}"] = s * jax.random.normal(keys[3 + 2 * i], (1, n_filters), jnp.float32)
    p["wfc"] = s * jax.random.normal(keys[10],
                                     (len(filter_sizes) * n_filters, output_dim), jnp.float32)
    p["bfc"] = s * jax.random.normal(keys[11], (1, output_dim), jnp.float32)
    return p


if __name__ == "__main__":
    embedding_dim, n_filters, output_dim = 32, 8, 4
    filter_sizes = (3, 4, 5, 6)

    key = jax.random.PRNGKey(0)
    k_x, k_p, k_x2 = jax.random.split(key, 3)
    params = init_params(k_p, embedding_dim, n_filters, filter_sizes, output_dim)

    # Primary shape.
    B, L = 8, 16
    x = jax.random.normal(k_x, (B, L, embedding_dim), jnp.float32)
    ref = reference_forward(x, params, filter_sizes)

    # f32, chip-/size-aware auto tiling (small input -> single grid step).
    fwd = jax.jit(functools.partial(cnn_forward, filter_sizes=filter_sizes))
    out = fwd(x, params)
    jax.block_until_ready(out)
    assert out.shape == (B, output_dim)
    assert jnp.allclose(out, ref, atol=5e-4, rtol=5e-4), "f32 (auto tiling) mismatch"

    # Forced multi-tile grid path (exercises batch tiling + 'parallel' grid).
    fwd2 = jax.jit(functools.partial(cnn_forward, filter_sizes=filter_sizes,
                                     num_batch_tiles=2))
    out2 = fwd2(x, params)
    jax.block_until_ready(out2)
    assert jnp.allclose(out2, ref, atol=5e-4, rtol=5e-4), "f32 (2 tiles) mismatch"

    # bf16-input / f32-accumulate MXU path (weights/x pre-cast wrapper-side).
    fwd_bf16 = jax.jit(functools.partial(cnn_forward, filter_sizes=filter_sizes,
                                         compute_dtype=jnp.bfloat16))
    out_bf16 = fwd_bf16(x, params)
    jax.block_until_ready(out_bf16)
    assert jnp.allclose(out_bf16, ref, atol=2e-2, rtol=2e-2), "bf16 mismatch"

    # Ragged shape: odd L (padded to a multiple of 8) + batch not divisible
    # by the tile count (padded batch rows sliced off after the call).
    B2, L2 = 5, 13
    x2 = jax.random.normal(k_x2, (B2, L2, embedding_dim), jnp.float32)
    ref2 = reference_forward(x2, params, filter_sizes)
    out_r = jax.jit(functools.partial(cnn_forward, filter_sizes=filter_sizes,
                                      num_batch_tiles=2))(x2, params)
    jax.block_until_ready(out_r)
    assert out_r.shape == (B2, output_dim)
    assert jnp.allclose(out_r, ref2, atol=5e-4, rtol=5e-4), "f32 ragged mismatch"

    print("KERNEL_OK")
</pallas_src>

<mosaic_0001>
module attributes {stable_mosaic.version = 11 : i64} {
  func.func @cnn_kernel(%arg0: i32, %arg1: memref<128x32xf32, #tpu.memory_space<vmem>>, %arg2: memref<32x192xf32, #tpu.memory_space<vmem>>, %arg3: memref<1x32xf32, #tpu.memory_space<vmem>>, %arg4: memref<128x32xf32, #tpu.memory_space<vmem>>, %arg5: memref<32x4xf32, #tpu.memory_space<vmem>>, %arg6: memref<1x4xf32, #tpu.memory_space<vmem>>, %arg7: memref<1x8x4xf32, #tpu.memory_space<vmem>>) attributes {dimension_semantics = [#tpu.dimension_semantics<parallel>], iteration_bounds = array<i64: 1>, scalar_prefetch = 0 : i64, scratch_operands = 0 : i64, tpu.core_type = #tpu.core_type<tc>, window_params = [{transform_indices = @transform_0, window_bounds = array<i64: 128, 32>}, {pipeline_mode = #tpu.pipeline_mode<synchronous>, transform_indices = @transform_1, window_bounds = array<i64: 32, 192>}, {pipeline_mode = #tpu.pipeline_mode<synchronous>, transform_indices = @transform_2, window_bounds = array<i64: 1, 32>}, {pipeline_mode = #tpu.pipeline_mode<synchronous>, transform_indices = @transform_3, window_bounds = array<i64: 128, 32>}, {pipeline_mode = #tpu.pipeline_mode<synchronous>, transform_indices = @transform_4, window_bounds = array<i64: 32, 4>}, {pipeline_mode = #tpu.pipeline_mode<synchronous>, transform_indices = @transform_5, window_bounds = array<i64: 1, 4>}, {transform_indices = @transform_6, window_bounds = array<i64: 1, 8, 4>}]} {
    %c0 = arith.constant 0 : index
    %c0_0 = arith.constant 0 : index
    %0 = vector.load %arg1[%c0, %c0_0] : memref<128x32xf32, #tpu.memory_space<vmem>>, vector<128x32xf32>
    %c0_1 = arith.constant 0 : index
    %c0_2 = arith.constant 0 : index
    %1 = vector.load %arg2[%c0_1, %c0_2] : memref<32x192xf32, #tpu.memory_space<vmem>>, vector<32x192xf32>
    %cst = arith.constant dense<0.000000e+00> : vector<128x192xf32>
    %2 = tpu.matmul %0, %1, %cst {dimension_numbers = #tpu.dot_dimension_numbers<[1], [0], [0], [1], [0, 0, 1, 1], [], []>} : vector<128x32xf32>, vector<32x192xf32>, vector<128x192xf32> -> vector<128x192xf32>
    %3 = vector.extract_strided_slice %2 {offsets = [0, 0], sizes = [128, 32], strides = [1, 1]} : vector<128x192xf32> to vector<128x32xf32>
    %4 = vector.extract_strided_slice %2 {offsets = [0, 32], sizes = [128, 32], strides = [1, 1]} : vector<128x192xf32> to vector<128x32xf32>
    %c1_i32 = arith.constant 1 : i32
    %5 = tpu.dynamic_rotate %4 by %c1_i32 dim 0 : vector<128x32xf32>, i32 -> vector<128x32xf32>
    %6 = arith.addf %3, %5 : vector<128x32xf32>
    %7 = vector.extract_strided_slice %2 {offsets = [0, 64], sizes = [128, 32], strides = [1, 1]} : vector<128x192xf32> to vector<128x32xf32>
    %c2_i32 = arith.constant 2 : i32
    %8 = tpu.dynamic_rotate %7 by %c2_i32 dim 0 : vector<128x32xf32>, i32 -> vector<128x32xf32>
    %9 = arith.addf %6, %8 : vector<128x32xf32>
    %10 = vector.extract_strided_slice %2 {offsets = [0, 96], sizes = [128, 32], strides = [1, 1]} : vector<128x192xf32> to vector<128x32xf32>
    %c3_i32 = arith.constant 3 : i32
    %11 = tpu.dynamic_rotate %10 by %c3_i32 dim 0 : vector<128x32xf32>, i32 -> vector<128x32xf32>
    %12 = arith.addf %9, %11 : vector<128x32xf32>
    %13 = vector.extract_strided_slice %2 {offsets = [0, 128], sizes = [128, 32], strides = [1, 1]} : vector<128x192xf32> to vector<128x32xf32>
    %c4_i32 = arith.constant 4 : i32
    %14 = tpu.dynamic_rotate %13 by %c4_i32 dim 0 : vector<128x32xf32>, i32 -> vector<128x32xf32>
    %15 = arith.addf %12, %14 : vector<128x32xf32>
    %16 = vector.extract_strided_slice %2 {offsets = [0, 160], sizes = [128, 32], strides = [1, 1]} : vector<128x192xf32> to vector<128x32xf32>
    %c5_i32 = arith.constant 5 : i32
    %17 = tpu.dynamic_rotate %16 by %c5_i32 dim 0 : vector<128x32xf32>, i32 -> vector<128x32xf32>
    %18 = arith.addf %15, %17 : vector<128x32xf32>
    %c0_3 = arith.constant 0 : index
    %c0_4 = arith.constant 0 : index
    %19 = vector.load %arg3[%c0_3, %c0_4] : memref<1x32xf32, #tpu.memory_space<vmem>>, vector<1x32xf32>
    %20 = vector.broadcast %19 : vector<1x32xf32> to vector<128x32xf32>
    %21 = arith.addf %18, %20 : vector<128x32xf32>
    %cst_5 = arith.constant 0.000000e+00 : f32
    %22 = vector.broadcast %cst_5 : f32 to vector<128x32xf32>
    %23 = arith.maximumf %21, %22 : vector<128x32xf32>
    %c0_6 = arith.constant 0 : index
    %c0_7 = arith.constant 0 : index
    %24 = vector.load %arg4[%c0_6, %c0_7] : memref<128x32xf32, #tpu.memory_space<vmem>>, vector<128x32xf32>
    %25 = arith.mulf %23, %24 : vector<128x32xf32>
    %26 = vector.shape_cast %25 : vector<128x32xf32> to vector<8x16x32xf32>
    %cst_8 = arith.constant dense<0xFF800000> : vector<8x32xf32>
    %27 = vector.multi_reduction <maximumf>, %26, %cst_8 [1] : vector<8x16x32xf32> to vector<8x32xf32>
    %c0_9 = arith.constant 0 : index
    %c0_10 = arith.constant 0 : index
    %28 = vector.load %arg5[%c0_9, %c0_10] : memref<32x4xf32, #tpu.memory_space<vmem>>, vector<32x4xf32>
    %cst_11 = arith.constant dense<0.000000e+00> : vector<8x4xf32>
    %29 = tpu.matmul %27, %28, %cst_11 {dimension_numbers = #tpu.dot_dimension_numbers<[1], [0], [0], [1], [0, 0, 1, 1], [], []>} : vector<8x32xf32>, vector<32x4xf32>, vector<8x4xf32> -> vector<8x4xf32>
    %c0_12 = arith.constant 0 : index
    %c0_13 = arith.constant 0 : index
    %30 = vector.load %arg6[%c0_12, %c0_13] : memref<1x4xf32, #tpu.memory_space<vmem>>, vector<1x4xf32>
    %31 = vector.broadcast %30 : vector<1x4xf32> to vector<8x4xf32>
    %32 = arith.addf %29, %31 : vector<8x4xf32>
    %c0_14 = arith.constant 0 : index
    %c0_15 = arith.constant 0 : index
    %c0_16 = arith.constant 0 : index
    %33 = vector.load %arg7[%c0_14, %c0_15, %c0_16] : memref<1x8x4xf32, #tpu.memory_space<vmem>>, vector<1x8x4xf32>
    %34 = vector.shape_cast %33 : vector<1x8x4xf32> to vector<8x4xf32>
    %35 = vector.shape_cast %32 : vector<8x4xf32> to vector<1x8x4xf32>
    tpu.vector_store %arg7[%c0_14, %c0_15, %c0_16], %35 {strides = array<i32>} : memref<1x8x4xf32, #tpu.memory_space<vmem>>, vector<1x8x4xf32>,
    return
  }
  func.func @transform_0(%arg0: i32) -> (i32, i32) {
    %c0_i32 = arith.constant 0 : i32
    %c0_i32_0 = arith.constant 0 : i32
    return %arg0, %c0_i32 : i32, i32
  }
  func.func @transform_1(%arg0: i32) -> (i32, i32) {
    %c0_i32 = arith.constant 0 : i32
    %c0_i32_0 = arith.constant 0 : i32
    %c0_i32_1 = arith.constant 0 : i32
    return %c0_i32, %c0_i32_0 : i32, i32
  }
  func.func @transform_2(%arg0: i32) -> (i32, i32) {
    %c0_i32 = arith.constant 0 : i32
    %c0_i32_0 = arith.constant 0 : i32
    %c0_i32_1 = arith.constant 0 : i32
    return %c0_i32, %c0_i32_0 : i32, i32
  }
  func.func @transform_3(%arg0: i32) -> (i32, i32) {
    %c0_i32 = arith.constant 0 : i32
    %c0_i32_0 = arith.constant 0 : i32
    %c0_i32_1 = arith.constant 0 : i32
    return %c0_i32, %c0_i32_0 : i32, i32
  }
  func.func @transform_4(%arg0: i32) -> (i32, i32) {
    %c0_i32 = arith.constant 0 : i32
    %c0_i32_0 = arith.constant 0 : i32
    %c0_i32_1 = arith.constant 0 : i32
    return %c0_i32, %c0_i32_0 : i32, i32
  }
  func.func @transform_5(%arg0: i32) -> (i32, i32) {
    %c0_i32 = arith.constant 0 : i32
    %c0_i32_0 = arith.constant 0 : i32
    %c0_i32_1 = arith.constant 0 : i32
    return %c0_i32, %c0_i32_0 : i32, i32
  }
  func.func @transform_6(%arg0: i32) -> (i32, i32, i32) {
    %c0_i32 = arith.constant 0 : i32
    %c0_i32_0 = arith.constant 0 : i32
    %c0_i32_1 = arith.constant 0 : i32
    return %arg0, %c0_i32, %c0_i32_0 : i32, i32, i32
  }
}

</mosaic_0001>

<llo_original>
// kernel: cnn_forward.1
$region0: #{cnn_forward.1}
  #allocation0 [shape = 'u32[]', space=smem, size = 0x4, offset = 0x4, fixed_abs, tag = 'smem constant byte address 0x4 - core index']
  #allocation1 [shape = 'u32[144,128]{1,0:T(1,128)}', space=vmem, size = 0x12000, scoped, tag = 'internal scratch']
  %s0 = inlined_call_operand.vmem [shape: f32[128,32], index: 0, kind: input, shape index: {}]
  %s1 = inlined_call_operand.vmem [shape: f32[32,192], index: 1, kind: input, shape index: {}]
  %s2 = inlined_call_operand.vmem [shape: f32[1,32], index: 2, kind: input, shape index: {}]
  %s3 = inlined_call_operand.vmem [shape: f32[128,32], index: 3, kind: input, shape index: {}]
  %s4 = inlined_call_operand.vmem [shape: f32[32,4], index: 4, kind: input, shape index: {}]
  %s5 = inlined_call_operand.vmem [shape: f32[1,4], index: 5, kind: input, shape index: {}]
  %s6 = inlined_call_operand.vmem [shape: f32[1,8,4], index: 6, kind: output, shape index: {}]
  %s7 = sld [smem:[#allocation0]]
  $region34: #{cnn_forward.1} parent=0
    _
  %s9 = ssub.s32 1, %s7
  %s10 = scalar_select 0, %s9, %s7
  // Predicated region
  $region2: #{cnn_forward.1} parent=0 // pred_check
    _
  $region3: #{cnn_forward.1} parent=0 // pred_check_branch
    %12 = sbr.rel (0) target = $region5
  $region4: #{cnn_forward.1} parent=0 // pred_region
    _
  $region5: #{cnn_forward.1} parent=0 // pred_fallthru
    _
  // Predicated region
  $region6: #{cnn_forward.1} parent=0 // pred_check
    _
  $region7: #{cnn_forward.1} parent=0 // pred_check_branch
    %14 = sbr.rel (0) target = $region9
  $region8: #{cnn_forward.1} parent=0 // pred_region
    _
  $region9: #{cnn_forward.1} parent=0 // pred_fallthru
    _
  // Predicated region
  $region10: #{cnn_forward.1} parent=0 // pred_check
    _
  $region11: #{cnn_forward.1} parent=0 // pred_check_branch
    %16 = sbr.rel (0) target = $region13
  $region12: #{cnn_forward.1} parent=0 // pred_region
    _
  $region13: #{cnn_forward.1} parent=0 // pred_fallthru
    _
  // Predicated region
  $region14: #{cnn_forward.1} parent=0 // pred_check
    _
  $region15: #{cnn_forward.1} parent=0 // pred_check_branch
    %18 = sbr.rel (0) target = $region17
  $region16: #{cnn_forward.1} parent=0 // pred_region
    _
  $region17: #{cnn_forward.1} parent=0 // pred_fallthru
    _
  // Predicated region
  $region18: #{cnn_forward.1} parent=0 // pred_check
    _
  $region19: #{cnn_forward.1} parent=0 // pred_check_branch
    %20 = sbr.rel (0) target = $region21
  $region20: #{cnn_forward.1} parent=0 // pred_region
    _
  $region21: #{cnn_forward.1} parent=0 // pred_fallthru
    _
  // Predicated region
  $region22: #{cnn_forward.1} parent=0 // pred_check
    _
  $region23: #{cnn_forward.1} parent=0 // pred_check_branch
    %22 = sbr.rel (0) target = $region25
  $region24: #{cnn_forward.1} parent=0 // pred_region
    _
  $region25: #{cnn_forward.1} parent=0 // pred_fallthru
    _
  %v23 = vld [vmem:[%s0] sm:$0xff]
  %v24 = vld [vmem:[%s0 + $0x8] sm:$0xff]
  %v25 = vld [vmem:[%s0 + $0x10] sm:$0xff]
  %v26 = vld [vmem:[%s0 + $0x18] sm:$0xff]
  %v27 = vld [vmem:[%s0 + $0x20] sm:$0xff]
  %v28 = vld [vmem:[%s0 + $0x28] sm:$0xff]
  %v29 = vld [vmem:[%s0 + $0x30] sm:$0xff]
  %v30 = vld [vmem:[%s0 + $0x38] sm:$0xff]
  %v31 = vld [vmem:[%s0 + $0x40] sm:$0xff]
  %v32 = vld [vmem:[%s0 + $0x48] sm:$0xff]
  %v33 = vld [vmem:[%s0 + $0x50] sm:$0xff]
  %v34 = vld [vmem:[%s0 + $0x58] sm:$0xff]
  %v35 = vld [vmem:[%s0 + $0x60] sm:$0xff]
  %v36 = vld [vmem:[%s0 + $0x68] sm:$0xff]
  %v37 = vld [vmem:[%s0 + $0x70] sm:$0xff]
  %v38 = vld [vmem:[%s0 + $0x78] sm:$0xff]
  %v39 = vld [vmem:[%s1] sm:$0xff]
  %v40 = vld [vmem:[%s1 + $0x8] sm:$0xff]
  %v41 = vld [vmem:[%s1 + $0x10] sm:$0xff]
  %v42 = vld [vmem:[%s1 + $0x18] sm:$0xff]
  %v43 = vld [vmem:[%s1 + $0x20] sm:$0xff]
  %v44 = vld [vmem:[%s1 + $0x28] sm:$0xff]
  %v45 = vld [vmem:[%s1 + $0x30] sm:$0xff]
  %v46 = vld [vmem:[%s1 + $0x38] sm:$0xff]
  %vm47 = vcmask 261120
  %v49 = vsel %vm47, %v23, 0
  %v52 = vsel %vm47, %v24, 0
  %v55 = vsel %vm47, %v25, 0
  %v58 = vsel %vm47, %v26, 0
  %v61 = vsel %vm47, %v27, 0
  %v64 = vsel %vm47, %v28, 0
  %v67 = vsel %vm47, %v29, 0
  %v70 = vsel %vm47, %v30, 0
  %v73 = vsel %vm47, %v31, 0
  %v76 = vsel %vm47, %v32, 0
  %v79 = vsel %vm47, %v33, 0
  %v82 = vsel %vm47, %v34, 0
  %v85 = vsel %vm47, %v35, 0
  %v88 = vsel %vm47, %v36, 0
  %v91 = vsel %vm47, %v37, 0
  %v94 = vsel %vm47, %v38, 0
  %96 = vmatprep.subr.mxu0 0.0
  %97 = vmatpush1.msra.mxu0 0.0
  %98 = vmatprep.subr.mxu0 0.0
  %99 = vmatpush1.msra.mxu0 0.0
  %100 = vmatprep.subr.mxu0 0.0
  %101 = vmatpush1.msra.mxu0 0.0
  %102 = vmatprep.subr.mxu0 0.0
  %103 = vmatpush1.msra.mxu0 0.0
  %104 = vmatprep.subr.mxu0 0.0
  %105 = vmatpush1.msra.mxu0 0.0
  %106 = vmatprep.subr.mxu0 0.0
  %107 = vmatpush1.msra.mxu0 0.0
  %108 = vmatprep.subr.mxu0 0.0
  %109 = vmatpush1.msra.mxu0 0.0
  %110 = vmatprep.subr.mxu0 0.0
  %111 = vmatpush1.msra.mxu0 0.0
  %112 = vmatprep.subr.mxu0 0.0
  %113 = vmatpush1.msra.mxu0 0.0
  %114 = vmatprep.subr.mxu0 0.0
  %115 = vmatpush1.msra.mxu0 0.0
  %116 = vmatprep.subr.mxu0 0.0
  %117 = vmatpush1.msra.mxu0 0.0
  %118 = vmatprep.subr.mxu0 0.0
  %119 = vmatpush1.msra.mxu0 0.0
  %120 = vmatprep.subr.mxu0 %v46
  %121 = vmatpush1.msra.mxu0 %v45
  %122 = vmatprep.subr.mxu0 %v44
  %123 = vmatpush1.msra.mxu0 %v43
  %124 = vmatprep.subr.mxu0 %v42
  %125 = vmatpush1.msra.mxu0 %v41
  %126 = vmatprep.subr.mxu0 %v40
  %127 = vmatpush1.msra.mxu0 %v39
  %128 = vmatprep.subr.mxu0 0.0
  %129 = vmatpush2.msra.mxu0 0.0
  %130 = vmatprep.subr.mxu0 0.0
  %131 = vmatpush2.msra.mxu0 0.0
  %132 = vmatprep.subr.mxu0 0.0
  %133 = vmatpush2.msra.mxu0 0.0
  %134 = vmatprep.subr.mxu0 0.0
  %135 = vmatpush2.msra.mxu0 0.0
  %136 = vmatprep.subr.mxu0 0.0
  %137 = vmatpush2.msra.mxu0 0.0
  %138 = vmatprep.subr.mxu0 0.0
  %139 = vmatpush2.msra.mxu0 0.0
  %140 = vmatprep.subr.mxu0 0.0
  %141 = vmatpush2.msra.mxu0 0.0
  %142 = vmatprep.subr.mxu0 0.0
  %143 = vmatpush2.msra.mxu0 0.0
  %144 = vmatprep.subr.mxu0 0.0
  %145 = vmatpush2.msra.mxu0 0.0
  %146 = vmatprep.subr.mxu0 0.0
  %147 = vmatpush2.msra.mxu0 0.0
  %148 = vmatprep.subr.mxu0 0.0
  %149 = vmatpush2.msra.mxu0 0.0
  %150 = vmatprep.subr.mxu0 0.0
  %151 = vmatpush2.msra.mxu0 0.0
  %152 = vmatprep.subr.mxu0 0.0
  %153 = vmatpush2.msra.mxu0 0.0
  %154 = vmatprep.subr.mxu0 0.0
  %155 = vmatpush2.msra.mxu0 0.0
  %156 = vmatprep.subr.mxu0 0.0
  %157 = vmatpush2.msra.mxu0 0.0
  %158 = vmatprep.subr.mxu0 0.0
  %159 = vmatpush2.msra.mxu0 0.0
  %160 = vmatprep.mubr.f32.mxu0 0.0
  %161 = vmatmul.mubr.f32.gmra.mxu0 %v49
  %v162 = vpop.f32.mrf.mxu0
  %v163 = vadd.f32 0.0, %v162
  %v164 = vpop.f32.mrf.mxu0
  %v165 = vadd.f32 0.0, %v164
  %166 = vmatprep.mubr.f32.mxu0 0.0
  %167 = vmatmul.mubr.f32.gmra.mxu0 %v52
  %v168 = vpop.f32.mrf.mxu0
  %v169 = vadd.f32 0.0, %v168
  %v170 = vpop.f32.mrf.mxu0
  %v171 = vadd.f32 0.0, %v170
  %172 = vmatprep.mubr.f32.mxu0 0.0
  %173 = vmatmul.mubr.f32.gmra.mxu0 %v55
  %v174 = vpop.f32.mrf.mxu0
  %v175 = vadd.f32 0.0, %v174
  %v176 = vpop.f32.mrf.mxu0
  %v177 = vadd.f32 0.0, %v176
  %178 = vmatprep.mubr.f32.mxu0 0.0
  %179 = vmatmul.mubr.f32.gmra.mxu0 %v58
  %v180 = vpop.f32.mrf.mxu0
  %v181 = vadd.f32 0.0, %v180
  %v182 = vpop.f32.mrf.mxu0
  %v183 = vadd.f32 0.0, %v182
  %184 = vmatprep.mubr.f32.mxu0 0.0
  %185 = vmatmul.mubr.f32.gmra.mxu0 %v61
  %v186 = vpop.f32.mrf.mxu0
  %v187 = vadd.f32 0.0, %v186
  %v188 = vpop.f32.mrf.mxu0
  %v189 = vadd.f32 0.0, %v188
  %190 = vmatprep.mubr.f32.mxu0 0.0
  %191 = vmatmul.mubr.f32.gmra.mxu0 %v64
  %v192 = vpop.f32.mrf.mxu0
  %v193 = vadd.f32 0.0, %v192
  %v194 = vpop.f32.mrf.mxu0
  %v195 = vadd.f32 0.0, %v194
  %196 = vmatprep.mubr.f32.mxu0 0.0
  %197 = vmatmul.mubr.f32.gmra.mxu0 %v67
  %v198 = vpop.f32.mrf.mxu0
  %v199 = vadd.f32 0.0, %v198
  %v200 = vpop.f32.mrf.mxu0
  %v201 = vadd.f32 0.0, %v200
  %202 = vmatprep.mubr.f32.mxu0 0.0
  %203 = vmatmul.mubr.f32.gmra.mxu0 %v70
  %v204 = vpop.f32.mrf.mxu0
  %v205 = vadd.f32 0.0, %v204
  %v206 = vpop.f32.mrf.mxu0
  %v207 = vadd.f32 0.0, %v206
  %208 = vmatprep.mubr.f32.mxu0 0.0
  %209 = vmatmul.mubr.f32.gmra.mxu0 %v73
  %v210 = vpop.f32.mrf.mxu0
  %v211 = vadd.f32 0.0, %v210
  %v212 = vpop.f32.mrf.mxu0
  %v213 = vadd.f32 0.0, %v212
  %214 = vmatprep.mubr.f32.mxu0 0.0
  %215 = vmatmul.mubr.f32.gmra.mxu0 %v76
  %v216 = vpop.f32.mrf.mxu0
  %v217 = vadd.f32 0.0, %v216
  %v218 = vpop.f32.mrf.mxu0
  %v219 = vadd.f32 0.0, %v218
  %220 = vmatprep.mubr.f32.mxu0 0.0
  %221 = vmatmul.mubr.f32.gmra.mxu0 %v79
  %v222 = vpop.f32.mrf.mxu0
  %v223 = vadd.f32 0.0, %v222
  %v224 = vpop.f32.mrf.mxu0
  %v225 = vadd.f32 0.0, %v224
  %226 = vmatprep.mubr.f32.mxu0 0.0
  %227 = vmatmul.mubr.f32.gmra.mxu0 %v82
  %v228 = vpop.f32.mrf.mxu0
  %v229 = vadd.f32 0.0, %v228
  %v230 = vpop.f32.mrf.mxu0
  %v231 = vadd.f32 0.0, %v230
  %232 = vmatprep.mubr.f32.mxu0 0.0
  %233 = vmatmul.mubr.f32.gmra.mxu0 %v85
  %v234 = vpop.f32.mrf.mxu0
  %v235 = vadd.f32 0.0, %v234
  %v236 = vpop.f32.mrf.mxu0
  %v237 = vadd.f32 0.0, %v236
  %238 = vmatprep.mubr.f32.mxu0 0.0
  %239 = vmatmul.mubr.f32.gmra.mxu0 %v88
  %v240 = vpop.f32.mrf.mxu0
  %v241 = vadd.f32 0.0, %v240
  %v242 = vpop.f32.mrf.mxu0
  %v243 = vadd.f32 0.0, %v242
  %244 = vmatprep.mubr.f32.mxu0 0.0
  %245 = vmatmul.mubr.f32.gmra.mxu0 %v91
  %v246 = vpop.f32.mrf.mxu0
  %v247 = vadd.f32 0.0, %v246
  %v248 = vpop.f32.mrf.mxu0
  %v249 = vadd.f32 0.0, %v248
  %250 = vmatprep.mubr.f32.mxu0 0.0
  %251 = vmatmul.mubr.f32.gmra.mxu0 %v94
  %v252 = vpop.f32.mrf.mxu0
  %v253 = vadd.f32 0.0, %v252
  %v254 = vpop.f32.mrf.mxu0
  %v255 = vadd.f32 0.0, %v254
  %256 = vdwg.mxu0
  %273 = vrot.lane.b32.xlu0 %v163, 96
  %v274 = vpop.permute.xlu0 %273
  %275 = vrot.lane.b32.xlu0 %v169, 96
  %v276 = vpop.permute.xlu0 %275
  %277 = vrot.lane.b32.xlu0 %v175, 96
  %v278 = vpop.permute.xlu0 %277
  %279 = vrot.lane.b32.xlu0 %v181, 96
  %v280 = vpop.permute.xlu0 %279
  %281 = vrot.lane.b32.xlu0 %v187, 96
  %v282 = vpop.permute.xlu0 %281
  %283 = vrot.lane.b32.xlu0 %v193, 96
  %v284 = vpop.permute.xlu0 %283
  %285 = vrot.lane.b32.xlu0 %v199, 96
  %v286 = vpop.permute.xlu0 %285
  %287 = vrot.lane.b32.xlu0 %v205, 96
  %v288 = vpop.permute.xlu0 %287
  %289 = vrot.lane.b32.xlu0 %v211, 96
  %v290 = vpop.permute.xlu0 %289
  %291 = vrot.lane.b32.xlu0 %v217, 96
  %v292 = vpop.permute.xlu0 %291
  %293 = vrot.lane.b32.xlu0 %v223, 96
  %v294 = vpop.permute.xlu0 %293
  %295 = vrot.lane.b32.xlu0 %v229, 96
  %v296 = vpop.permute.xlu0 %295
  %297 = vrot.lane.b32.xlu0 %v235, 96
  %v298 = vpop.permute.xlu0 %297
  %299 = vrot.lane.b32.xlu0 %v241, 96
  %v300 = vpop.permute.xlu0 %299
  %301 = vrot.lane.b32.xlu0 %v247, 96
  %v302 = vpop.permute.xlu0 %301
  %303 = vrot.lane.b32.xlu0 %v253, 96
  %v304 = vpop.permute.xlu0 %303
  %v321 = vrot.slane %v274, 7
  %v322 = vrot.slane %v276, 7
  %v323 = vrot.slane %v278, 7
  %v324 = vrot.slane %v280, 7
  %v325 = vrot.slane %v282, 7
  %v326 = vrot.slane %v284, 7
  %v327 = vrot.slane %v286, 7
  %v328 = vrot.slane %v288, 7
  %v329 = vrot.slane %v290, 7
  %v330 = vrot.slane %v292, 7
  %v331 = vrot.slane %v294, 7
  %v332 = vrot.slane %v296, 7
  %v333 = vrot.slane %v298, 7
  %v334 = vrot.slane %v300, 7
  %v335 = vrot.slane %v302, 7
  %v336 = vrot.slane %v304, 7
  %v337 = vlaneseq
  %v338 = vshrl.u32 %v337, 7
  %vm339 = vcmp.lt.s32.totalorder %v338, 1
  %v340 = vsel %vm339, %v335, %v336
  %v341 = vsel %vm339, %v334, %v335
  %v342 = vsel %vm339, %v333, %v334
  %v343 = vsel %vm339, %v332, %v333
  %v344 = vsel %vm339, %v331, %v332
  %v345 = vsel %vm339, %v330, %v331
  %v346 = vsel %vm339, %v329, %v330
  %v347 = vsel %vm339, %v328, %v329
  %v348 = vsel %vm339, %v327, %v328
  %v349 = vsel %vm339, %v326, %v327
  %v350 = vsel %vm339, %v325, %v326
  %v351 = vsel %vm339, %v324, %v325
  %v352 = vsel %vm339, %v323, %v324
  %v353 = vsel %vm339, %v322, %v323
  %v354 = vsel %vm339, %v321, %v322
  %v355 = vsel %vm339, %v336, %v321
  %v356 = vadd.f32 %v163, %v355
  %v357 = vadd.f32 %v169, %v354
  %v358 = vadd.f32 %v175, %v353
  %v359 = vadd.f32 %v181, %v352
  %v360 = vadd.f32 %v187, %v351
  %v361 = vadd.f32 %v193, %v350
  %v362 = vadd.f32 %v199, %v349
  %v363 = vadd.f32 %v205, %v348
  %v364 = vadd.f32 %v211, %v347
  %v365 = vadd.f32 %v217, %v346
  %v366 = vadd.f32 %v223, %v345
  %v367 = vadd.f32 %v229, %v344
  %v368 = vadd.f32 %v235, %v343
  %v369 = vadd.f32 %v241, %v342
  %v370 = vadd.f32 %v247, %v341
  %v371 = vadd.f32 %v253, %v340
  %372 = vrot.lane.b32.xlu0 %v163, 64
  %v373 = vpop.permute.xlu0 %372
  %374 = vrot.lane.b32.xlu0 %v169, 64
  %v375 = vpop.permute.xlu0 %374
  %376 = vrot.lane.b32.xlu0 %v175, 64
  %v377 = vpop.permute.xlu0 %376
  %378 = vrot.lane.b32.xlu0 %v181, 64
  %v379 = vpop.permute.xlu0 %378
  %380 = vrot.lane.b32.xlu0 %v187, 64
  %v381 = vpop.permute.xlu0 %380
  %382 = vrot.lane.b32.xlu0 %v193, 64
  %v383 = vpop.permute.xlu0 %382
  %384 = vrot.lane.b32.xlu0 %v199, 64
  %v385 = vpop.permute.xlu0 %384
  %386 = vrot.lane.b32.xlu0 %v205, 64
  %v387 = vpop.permute.xlu0 %386
  %388 = vrot.lane.b32.xlu0 %v211, 64
  %v389 = vpop.permute.xlu0 %388
  %390 = vrot.lane.b32.xlu0 %v217, 64
  %v391 = vpop.permute.xlu0 %390
  %392 = vrot.lane.b32.xlu0 %v223, 64
  %v393 = vpop.permute.xlu0 %392
  %394 = vrot.lane.b32.xlu0 %v229, 64
  %v395 = vpop.permute.xlu0 %394
  %396 = vrot.lane.b32.xlu0 %v235, 64
  %v397 = vpop.permute.xlu0 %396
  %398 = vrot.lane.b32.xlu0 %v241, 64
  %v399 = vpop.permute.xlu0 %398
  %400 = vrot.lane.b32.xlu0 %v247, 64
  %v401 = vpop.permute.xlu0 %400
  %402 = vrot.lane.b32.xlu0 %v253, 64
  %v403 = vpop.permute.xlu0 %402
  %v420 = vrot.slane %v373, 6
  %v421 = vrot.slane %v375, 6
  %v422 = vrot.slane %v377, 6
  %v423 = vrot.slane %v379, 6
  %v424 = vrot.slane %v381, 6
  %v425 = vrot.slane %v383, 6
  %v426 = vrot.slane %v385, 6
  %v427 = vrot.slane %v387, 6
  %v428 = vrot.slane %v389, 6
  %v429 = vrot.slane %v391, 6
  %v430 = vrot.slane %v393, 6
  %v431 = vrot.slane %v395, 6
  %v432 = vrot.slane %v397, 6
  %v433 = vrot.slane %v399, 6
  %v434 = vrot.slane %v401, 6
  %v435 = vrot.slane %v403, 6
  %vm436 = vcmp.lt.s32.totalorder %v338, 2
  %v437 = vsel %vm436, %v434, %v435
  %v438 = vsel %vm436, %v433, %v434
  %v439 = vsel %vm436, %v432, %v433
  %v440 = vsel %vm436, %v431, %v432
  %v441 = vsel %vm436, %v430, %v431
  %v442 = vsel %vm436, %v429, %v430
  %v443 = vsel %vm436, %v428, %v429
  %v444 = vsel %vm436, %v427, %v428
  %v445 = vsel %vm436, %v426, %v427
  %v446 = vsel %vm436, %v425, %v426
  %v447 = vsel %vm436, %v424, %v425
  %v448 = vsel %vm436, %v423, %v424
  %v449 = vsel %vm436, %v422, %v423
  %v450 = vsel %vm436, %v421, %v422
  %v451 = vsel %vm436, %v420, %v421
  %v452 = vsel %vm436, %v435, %v420
  %v453 = vadd.f32 %v356, %v452
  %v454 = vadd.f32 %v357, %v451
  %v455 = vadd.f32 %v358, %v450
  %v456 = vadd.f32 %v359, %v449
  %v457 = vadd.f32 %v360, %v448
  %v458 = vadd.f32 %v361, %v447
  %v459 = vadd.f32 %v362, %v446
  %v460 = vadd.f32 %v363, %v445
  %v461 = vadd.f32 %v364, %v444
  %v462 = vadd.f32 %v365, %v443
  %v463 = vadd.f32 %v366, %v442
  %v464 = vadd.f32 %v367, %v441
  %v465 = vadd.f32 %v368, %v440
  %v466 = vadd.f32 %v369, %v439
  %v467 = vadd.f32 %v370, %v438
  %v468 = vadd.f32 %v371, %v437
  %469 = vrot.lane.b32.xlu0 %v163, 32
  %v470 = vpop.permute.xlu0 %469
  %471 = vrot.lane.b32.xlu0 %v169, 32
  %v472 = vpop.permute.xlu0 %471
  %473 = vrot.lane.b32.xlu0 %v175, 32
  %v474 = vpop.permute.xlu0 %473
  %475 = vrot.lane.b32.xlu0 %v181, 32
  %v476 = vpop.permute.xlu0 %475
  %477 = vrot.lane.b32.xlu0 %v187, 32
  %v478 = vpop.permute.xlu0 %477
  %479 = vrot.lane.b32.xlu0 %v193, 32
  %v480 = vpop.permute.xlu0 %479
  %481 = vrot.lane.b32.xlu0 %v199, 32
  %v482 = vpop.permute.xlu0 %481
  %483 = vrot.lane.b32.xlu0 %v205, 32
  %v484 = vpop.permute.xlu0 %483
  %485 = vrot.lane.b32.xlu0 %v211, 32
  %v486 = vpop.permute.xlu0 %485
  %487 = vrot.lane.b32.xlu0 %v217, 32
  %v488 = vpop.permute.xlu0 %487
  %489 = vrot.lane.b32.xlu0 %v223, 32
  %v490 = vpop.permute.xlu0 %489
  %491 = vrot.lane.b32.xlu0 %v229, 32
  %v492 = vpop.permute.xlu0 %491
  %493 = vrot.lane.b32.xlu0 %v235, 32
  %v494 = vpop.permute.xlu0 %493
  %495 = vrot.lane.b32.xlu0 %v241, 32
  %v496 = vpop.permute.xlu0 %495
  %497 = vrot.lane.b32.xlu0 %v247, 32
  %v498 = vpop.permute.xlu0 %497
  %499 = vrot.lane.b32.xlu0 %v253, 32
  %v500 = vpop.permute.xlu0 %499
  %v517 = vrot.slane %v470, 5
  %v518 = vrot.slane %v472, 5
  %v519 = vrot.slane %v474, 5
  %v520 = vrot.slane %v476, 5
  %v521 = vrot.slane %v478, 5
  %v522 = vrot.slane %v480, 5
  %v523 = vrot.slane %v482, 5
  %v524 = vrot.slane %v484, 5
  %v525 = vrot.slane %v486, 5
  %v526 = vrot.slane %v488, 5
  %v527 = vrot.slane %v490, 5
  %v528 = vrot.slane %v492, 5
  %v529 = vrot.slane %v494, 5
  %v530 = vrot.slane %v496, 5
  %v531 = vrot.slane %v498, 5
  %v532 = vrot.slane %v500, 5
  %vm533 = vcmp.lt.s32.totalorder %v338, 3
  %v534 = vsel %vm533, %v531, %v532
  %v535 = vsel %vm533, %v530, %v531
  %v536 = vsel %vm533, %v529, %v530
  %v537 = vsel %vm533, %v528, %v529
  %v538 = vsel %vm533, %v527, %v528
  %v539 = vsel %vm533, %v526, %v527
  %v540 = vsel %vm533, %v525, %v526
  %v541 = vsel %vm533, %v524, %v525
  %v542 = vsel %vm533, %v523, %v524
  %v543 = vsel %vm533, %v522, %v523
  %v544 = vsel %vm533, %v521, %v522
  %v545 = vsel %vm533, %v520, %v521
  %v546 = vsel %vm533, %v519, %v520
  %v547 = vsel %vm533, %v518, %v519
  %v548 = vsel %vm533, %v517, %v518
  %v549 = vsel %vm533, %v532, %v517
  %v550 = vadd.f32 %v453, %v549
  %v551 = vadd.f32 %v454, %v548
  %v552 = vadd.f32 %v455, %v547
  %v553 = vadd.f32 %v456, %v546
  %v554 = vadd.f32 %v457, %v545
  %v555 = vadd.f32 %v458, %v544
  %v556 = vadd.f32 %v459, %v543
  %v557 = vadd.f32 %v460, %v542
  %v558 = vadd.f32 %v461, %v541
  %v559 = vadd.f32 %v462, %v540
  %v560 = vadd.f32 %v463, %v539
  %v561 = vadd.f32 %v464, %v538
  %v562 = vadd.f32 %v465, %v537
  %v563 = vadd.f32 %v466, %v536
  %v564 = vadd.f32 %v467, %v535
  %v565 = vadd.f32 %v468, %v534
  %v566 = vrot.slane %v165, 4
  %v567 = vrot.slane %v171, 4
  %v568 = vrot.slane %v177, 4
  %v569 = vrot.slane %v183, 4
  %v570 = vrot.slane %v189, 4
  %v571 = vrot.slane %v195, 4
  %v572 = vrot.slane %v201, 4
  %v573 = vrot.slane %v207, 4
  %v574 = vrot.slane %v213, 4
  %v575 = vrot.slane %v219, 4
  %v576 = vrot.slane %v225, 4
  %v577 = vrot.slane %v231, 4
  %v578 = vrot.slane %v237, 4
  %v579 = vrot.slane %v243, 4
  %v580 = vrot.slane %v249, 4
  %v581 = vrot.slane %v255, 4
  %vm582 = vcmp.lt.s32.totalorder %v338, 4
  %v583 = vsel %vm582, %v580, %v581
  %v584 = vsel %vm582, %v579, %v580
  %v585 = vsel %vm582, %v578, %v579
  %v586 = vsel %vm582, %v577, %v578
  %v587 = vsel %vm582, %v576, %v577
  %v588 = vsel %vm582, %v575, %v576
  %v589 = vsel %vm582, %v574, %v575
  %v590 = vsel %vm582, %v573, %v574
  %v591 = vsel %vm582, %v572, %v573
  %v592 = vsel %vm582, %v571, %v572
  %v593 = vsel %vm582, %v570, %v571
  %v594 = vsel %vm582, %v569, %v570
  %v595 = vsel %vm582, %v568, %v569
  %v596 = vsel %vm582, %v567, %v568
  %v597 = vsel %vm582, %v566, %v567
  %v598 = vsel %vm582, %v581, %v566
  %v599 = vadd.f32 %v550, %v598
  %v600 = vadd.f32 %v551, %v597
  %v601 = vadd.f32 %v552, %v596
  %v602 = vadd.f32 %v553, %v595
  %v603 = vadd.f32 %v554, %v594
  %v604 = vadd.f32 %v555, %v593
  %v605 = vadd.f32 %v556, %v592
  %v606 = vadd.f32 %v557, %v591
  %v607 = vadd.f32 %v558, %v590
  %v608 = vadd.f32 %v559, %v589
  %v609 = vadd.f32 %v560, %v588
  %v610 = vadd.f32 %v561, %v587
  %v611 = vadd.f32 %v562, %v586
  %v612 = vadd.f32 %v563, %v585
  %v613 = vadd.f32 %v564, %v584
  %v614 = vadd.f32 %v565, %v583
  %631 = vrot.lane.b32.xlu0 %v165, 96
  %v632 = vpop.permute.xlu0 %631
  %633 = vrot.lane.b32.xlu0 %v171, 96
  %v634 = vpop.permute.xlu0 %633
  %635 = vrot.lane.b32.xlu0 %v177, 96
  %v636 = vpop.permute.xlu0 %635
  %637 = vrot.lane.b32.xlu0 %v183, 96
  %v638 = vpop.permute.xlu0 %637
  %639 = vrot.lane.b32.xlu0 %v189, 96
  %v640 = vpop.permute.xlu0 %639
  %641 = vrot.lane.b32.xlu0 %v195, 96
  %v642 = vpop.permute.xlu0 %641
  %643 = vrot.lane.b32.xlu0 %v201, 96
  %v644 = vpop.permute.xlu0 %643
  %645 = vrot.lane.b32.xlu0 %v207, 96
  %v646 = vpop.permute.xlu0 %645
  %647 = vrot.lane.b32.xlu0 %v213, 96
  %v648 = vpop.permute.xlu0 %647
  %649 = vrot.lane.b32.xlu0 %v219, 96
  %v650 = vpop.permute.xlu0 %649
  %651 = vrot.lane.b32.xlu0 %v225, 96
  %v652 = vpop.permute.xlu0 %651
  %653 = vrot.lane.b32.xlu0 %v231, 96
  %v654 = vpop.permute.xlu0 %653
  %655 = vrot.lane.b32.xlu0 %v237, 96
  %v656 = vpop.permute.xlu0 %655
  %657 = vrot.lane.b32.xlu0 %v243, 96
  %v658 = vpop.permute.xlu0 %657
  %659 = vrot.lane.b32.xlu0 %v249, 96
  %v660 = vpop.permute.xlu0 %659
  %661 = vrot.lane.b32.xlu0 %v255, 96
  %v662 = vpop.permute.xlu0 %661
  %v679 = vrot.slane %v632, 3
  %v680 = vrot.slane %v634, 3
  %v681 = vrot.slane %v636, 3
  %v682 = vrot.slane %v638, 3
  %v683 = vrot.slane %v640, 3
  %v684 = vrot.slane %v642, 3
  %v685 = vrot.slane %v644, 3
  %v686 = vrot.slane %v646, 3
  %v687 = vrot.slane %v648, 3
  %v688 = vrot.slane %v650, 3
  %v689 = vrot.slane %v652, 3
  %v690 = vrot.slane %v654, 3
  %v691 = vrot.slane %v656, 3
  %v692 = vrot.slane %v658, 3
  %v693 = vrot.slane %v660, 3
  %v694 = vrot.slane %v662, 3
  %vm695 = vcmp.lt.s32.totalorder %v338, 5
  %v696 = vsel %vm695, %v693, %v694
  %v697 = vsel %vm695, %v692, %v693
  %v698 = vsel %vm695, %v691, %v692
  %v699 = vsel %vm695, %v690, %v691
  %v700 = vsel %vm695, %v689, %v690
  %v701 = vsel %vm695, %v688, %v689
  %v702 = vsel %vm695, %v687, %v688
  %v703 = vsel %vm695, %v686, %v687
  %v704 = vsel %vm695, %v685, %v686
  %v705 = vsel %vm695, %v684, %v685
  %v706 = vsel %vm695, %v683, %v684
  %v707 = vsel %vm695, %v682, %v683
  %v708 = vsel %vm695, %v681, %v682
  %v709 = vsel %vm695, %v680, %v681
  %v710 = vsel %vm695, %v679, %v680
  %v711 = vsel %vm695, %v694, %v679
  %v712 = vadd.f32 %v599, %v711
  %v713 = vadd.f32 %v600, %v710
  %v714 = vadd.f32 %v601, %v709
  %v715 = vadd.f32 %v602, %v708
  %v716 = vadd.f32 %v603, %v707
  %v717 = vadd.f32 %v604, %v706
  %v718 = vadd.f32 %v605, %v705
  %v719 = vadd.f32 %v606, %v704
  %v720 = vadd.f32 %v607, %v703
  %v721 = vadd.f32 %v608, %v702
  %v722 = vadd.f32 %v609, %v701
  %v723 = vadd.f32 %v610, %v700
  %v724 = vadd.f32 %v611, %v699
  %v725 = vadd.f32 %v612, %v698
  %v726 = vadd.f32 %v613, %v697
  %v727 = vadd.f32 %v614, %v696
  %v728 = vld [vmem:[%s2] sm:$0x1]
  %v730 = vlaneseq
  %v731 = vshrl.u32 %v730, 7
  %v732 = vsub.s32 0, %v731
  %v733 = vrot.slane %v728, %v732
  %v735 = vadd.f32 %v712, %v733
  %v736 = vadd.f32 %v713, %v733
  %v737 = vadd.f32 %v714, %v733
  %v738 = vadd.f32 %v715, %v733
  %v739 = vadd.f32 %v716, %v733
  %v740 = vadd.f32 %v717, %v733
  %v741 = vadd.f32 %v718, %v733
  %v742 = vadd.f32 %v719, %v733
  %v743 = vadd.f32 %v720, %v733
  %v744 = vadd.f32 %v721, %v733
  %v745 = vadd.f32 %v722, %v733
  %v746 = vadd.f32 %v723, %v733
  %v747 = vadd.f32 %v724, %v733
  %v748 = vadd.f32 %v725, %v733
  %v749 = vadd.f32 %v726, %v733
  %v750 = vadd.f32 %v727, %v733
  %v751 = vmax.f32 %v735, 0.0
  %v752 = vmax.f32 %v736, 0.0
  %v753 = vmax.f32 %v737, 0.0
  %v754 = vmax.f32 %v738, 0.0
  %v755 = vmax.f32 %v739, 0.0
  %v756 = vmax.f32 %v740, 0.0
  %v757 = vmax.f32 %v741, 0.0
  %v758 = vmax.f32 %v742, 0.0
  %v759 = vmax.f32 %v743, 0.0
  %v760 = vmax.f32 %v744, 0.0
  %v761 = vmax.f32 %v745, 0.0
  %v762 = vmax.f32 %v746, 0.0
  %v763 = vmax.f32 %v747, 0.0
  %v764 = vmax.f32 %v748, 0.0
  %v765 = vmax.f32 %v749, 0.0
  %v766 = vmax.f32 %v750, 0.0
  %v767 = vld [vmem:[%s3] sm:$0xff]
  %v768 = vld [vmem:[%s3 + $0x8] sm:$0xff]
  %v769 = vld [vmem:[%s3 + $0x10] sm:$0xff]
  %v770 = vld [vmem:[%s3 + $0x18] sm:$0xff]
  %v771 = vld [vmem:[%s3 + $0x20] sm:$0xff]
  %v772 = vld [vmem:[%s3 + $0x28] sm:$0xff]
  %v773 = vld [vmem:[%s3 + $0x30] sm:$0xff]
  %v774 = vld [vmem:[%s3 + $0x38] sm:$0xff]
  %v775 = vld [vmem:[%s3 + $0x40] sm:$0xff]
  %v776 = vld [vmem:[%s3 + $0x48] sm:$0xff]
  %v777 = vld [vmem:[%s3 + $0x50] sm:$0xff]
  %v778 = vld [vmem:[%s3 + $0x58] sm:$0xff]
  %v779 = vld [vmem:[%s3 + $0x60] sm:$0xff]
  %v780 = vld [vmem:[%s3 + $0x68] sm:$0xff]
  %v781 = vld [vmem:[%s3 + $0x70] sm:$0xff]
  %v782 = vld [vmem:[%s3 + $0x78] sm:$0xff]
  %v783 = vmul.f32 %v751, %v767
  %v784 = vmul.f32 %v752, %v768
  %v785 = vmul.f32 %v753, %v769
  %v786 = vmul.f32 %v754, %v770
  %v787 = vmul.f32 %v755, %v771
  %v788 = vmul.f32 %v756, %v772
  %v789 = vmul.f32 %v757, %v773
  %v790 = vmul.f32 %v758, %v774
  %v791 = vmul.f32 %v759, %v775
  %v792 = vmul.f32 %v760, %v776
  %v793 = vmul.f32 %v761, %v777
  %v794 = vmul.f32 %v762, %v778
  %v795 = vmul.f32 %v763, %v779
  %v796 = vmul.f32 %v764, %v780
  %v797 = vmul.f32 %v765, %v781
  %v798 = vmul.f32 %v766, %v782
  %v799 = vsel %vm47, %v783, -inf
  %v800 = vsel %vm47, %v784, -inf
  %v801 = vmax.f32 %v799, %v800
  %v802 = vrot.slane %v801, 4
  %v803 = vmax.f32 %v801, %v802
  %v804 = vrot.slane %v803, 2
  %v805 = vmax.f32 %v803, %v804
  %v806 = vrot.slane %v805, 1
  %v807 = vmax.f32 %v805, %v806
  %v808 = vsel %vm47, %v785, -inf
  %v809 = vsel %vm47, %v786, -inf
  %v810 = vmax.f32 %v808, %v809
  %v811 = vrot.slane %v810, 4
  %v812 = vmax.f32 %v810, %v811
  %v813 = vrot.slane %v812, 2
  %v814 = vmax.f32 %v812, %v813
  %v815 = vrot.slane %v814, 1
  %v816 = vmax.f32 %v814, %v815
  %v817 = vsel %vm47, %v787, -inf
  %v818 = vsel %vm47, %v788, -inf
  %v819 = vmax.f32 %v817, %v818
  %v820 = vrot.slane %v819, 4
  %v821 = vmax.f32 %v819, %v820
  %v822 = vrot.slane %v821, 2
  %v823 = vmax.f32 %v821, %v822
  %v824 = vrot.slane %v823, 1
  %v825 = vmax.f32 %v823, %v824
  %v826 = vsel %vm47, %v789, -inf
  %v827 = vsel %vm47, %v790, -inf
  %v828 = vmax.f32 %v826, %v827
  %v829 = vrot.slane %v828, 4
  %v830 = vmax.f32 %v828, %v829
  %v831 = vrot.slane %v830, 2
  %v832 = vmax.f32 %v830, %v831
  %v833 = vrot.slane %v832, 1
  %v834 = vmax.f32 %v832, %v833
  %v835 = vsel %vm47, %v791, -inf
  %v836 = vsel %vm47, %v792, -inf
  %v837 = vmax.f32 %v835, %v836
  %v838 = vrot.slane %v837, 4
  %v839 = vmax.f32 %v837, %v838
  %v840 = vrot.slane %v839, 2
  %v841 = vmax.f32 %v839, %v840
  %v842 = vrot.slane %v841, 1
  %v843 = vmax.f32 %v841, %v842
  %v844 = vsel %vm47, %v793, -inf
  %v845 = vsel %vm47, %v794, -inf
  %v846 = vmax.f32 %v844, %v845
  %v847 = vrot.slane %v846, 4
  %v848 = vmax.f32 %v846, %v847
  %v849 = vrot.slane %v848, 2
  %v850 = vmax.f32 %v848, %v849
  %v851 = vrot.slane %v850, 1
  %v852 = vmax.f32 %v850, %v851
  %v853 = vsel %vm47, %v795, -inf
  %v854 = vsel %vm47, %v796, -inf
  %v855 = vmax.f32 %v853, %v854
  %v856 = vrot.slane %v855, 4
  %v857 = vmax.f32 %v855, %v856
  %v858 = vrot.slane %v857, 2
  %v859 = vmax.f32 %v857, %v858
  %v860 = vrot.slane %v859, 1
  %v861 = vmax.f32 %v859, %v860
  %v862 = vsel %vm47, %v797, -inf
  %v863 = vsel %vm47, %v798, -inf
  %v864 = vmax.f32 %v862, %v863
  %v865 = vrot.slane %v864, 4
  %v866 = vmax.f32 %v864, %v865
  %v867 = vrot.slane %v866, 2
  %v868 = vmax.f32 %v866, %v867
  %v869 = vrot.slane %v868, 1
  %v870 = vmax.f32 %v868, %v869
  %v871 = vld [vmem:[%s4] sm:$0xff]
  %v872 = vld [vmem:[%s4 + $0x8] sm:$0xff]
  %v873 = vld [vmem:[%s4 + $0x10] sm:$0xff]
  %v874 = vld [vmem:[%s4 + $0x18] sm:$0xff]
  %v875 = vld [vmem:[%s5] sm:$0x1]
  %v877 = vlaneseq
  %v878 = vshrl.u32 %v877, 7
  %v879 = vsub.s32 0, %v878
  %v880 = vrot.slane %v875, %v879
  %vm890 = vcmask 1041409
  %v891 = vsel %vm890, %v816, %v807
  %vm892 = vcmask 1042434
  %v893 = vsel %vm892, %v825, %v891
  %vm894 = vcmask 1043459
  %v895 = vsel %vm894, %v834, %v893
  %vm896 = vcmask 1044484
  %v897 = vsel %vm896, %v843, %v895
  %vm898 = vcmask 1045509
  %v899 = vsel %vm898, %v852, %v897
  %vm900 = vcmask 1046534
  %v901 = vsel %vm900, %v861, %v899
  %vm902 = vcmask 1047559
  %v903 = vsel %vm902, %v870, %v901
  %v904 = vsel %vm47, %v903, 0
  %906 = vmatprep.subr.mxu0 0.0
  %907 = vmatpush1.msra.mxu0 0.0
  %908 = vmatprep.subr.mxu0 0.0
  %909 = vmatpush1.msra.mxu0 0.0
  %910 = vmatprep.subr.mxu0 0.0
  %911 = vmatpush1.msra.mxu0 0.0
  %912 = vmatprep.subr.mxu0 0.0
  %913 = vmatpush1.msra.mxu0 0.0
  %914 = vmatprep.subr.mxu0 0.0
  %915 = vmatpush1.msra.mxu0 0.0
  %916 = vmatprep.subr.mxu0 0.0
  %917 = vmatpush1.msra.mxu0 0.0
  %918 = vmatprep.subr.mxu0 0.0
  %919 = vmatpush1.msra.mxu0 0.0
  %920 = vmatprep.subr.mxu0 0.0
  %921 = vmatpush1.msra.mxu0 0.0
  %922 = vmatprep.subr.mxu0 0.0
  %923 = vmatpush1.msra.mxu0 0.0
  %924 = vmatprep.subr.mxu0 0.0
  %925 = vmatpush1.msra.mxu0 0.0
  %926 = vmatprep.subr.mxu0 0.0
  %927 = vmatpush1.msra.mxu0 0.0
  %928 = vmatprep.subr.mxu0 0.0
  %929 = vmatpush1.msra.mxu0 0.0
  %930 = vmatprep.subr.mxu0 0.0
  %931 = vmatpush1.msra.mxu0 %v874
  %932 = vmatprep.subr.mxu0 0.0
  %933 = vmatpush1.msra.mxu0 %v873
  %934 = vmatprep.subr.mxu0 0.0
  %935 = vmatpush1.msra.mxu0 %v872
  %936 = vmatprep.subr.mxu0 0.0
  %937 = vmatpush1.msra.mxu0 %v871
  %938 = vmatprep.subr.mxu0 0.0
  %939 = vmatpush2.msra.mxu0 0.0
  %940 = vmatprep.subr.mxu0 0.0
  %941 = vmatpush2.msra.mxu0 0.0
  %942 = vmatprep.subr.mxu0 0.0
  %943 = vmatpush2.msra.mxu0 0.0
  %944 = vmatprep.subr.mxu0 0.0
  %945 = vmatpush2.msra.mxu0 0.0
  %946 = vmatprep.subr.mxu0 0.0
  %947 = vmatpush2.msra.mxu0 0.0
  %948 = vmatprep.subr.mxu0 0.0
  %949 = vmatpush2.msra.mxu0 0.0
  %950 = vmatprep.subr.mxu0 0.0
  %951 = vmatpush2.msra.mxu0 0.0
  %952 = vmatprep.subr.mxu0 0.0
  %953 = vmatpush2.msra.mxu0 0.0
  %954 = vmatprep.subr.mxu0 0.0
  %955 = vmatpush2.msra.mxu0 0.0
  %956 = vmatprep.subr.mxu0 0.0
  %957 = vmatpush2.msra.mxu0 0.0
  %958 = vmatprep.subr.mxu0 0.0
  %959 = vmatpush2.msra.mxu0 0.0
  %960 = vmatprep.subr.mxu0 0.0
  %961 = vmatpush2.msra.mxu0 0.0
  %962 = vmatprep.subr.mxu0 0.0
  %963 = vmatpush2.msra.mxu0 0.0
  %964 = vmatprep.subr.mxu0 0.0
  %965 = vmatpush2.msra.mxu0 0.0
  %966 = vmatprep.subr.mxu0 0.0
  %967 = vmatpush2.msra.mxu0 0.0
  %968 = vmatprep.subr.mxu0 0.0
  %969 = vmatpush2.msra.mxu0 0.0
  %970 = vmatprep.mubr.f32.mxu0 0.0
  %971 = vmatmul.mubr.f32.gmra.mxu0 %v904
  %v972 = vpop.f32.mrf.mxu0
  %v973 = vadd.f32 %v880, %v972
  %v974 = vpop.f32.mrf.mxu0
  %975 = vdwg.mxu0
  %vm976 = vcmask 31744
  %977 = vst.msk [vmem:[%s6] sm:$0xff] %vm976, %v973
  // Predicated region
  $region26: #{cnn_forward.1} parent=0 // pred_check
    _
  $region27: #{cnn_forward.1} parent=0 // pred_check_branch
    %979 = sbr.rel (0) target = $region29
  $region28: #{cnn_forward.1} parent=0 // pred_region
    _
  $region29: #{cnn_forward.1} parent=0 // pred_fallthru
    _
  // Predicated region
  $region30: #{cnn_forward.1} parent=0 // pred_check
    _
  $region31: #{cnn_forward.1} parent=0 // pred_check_branch
    %981 = sbr.rel (0) target = $region33
  $region32: #{cnn_forward.1} parent=0 // pred_region
    _
  $region33: #{cnn_forward.1} parent=0 // pred_fallthru
    _

</llo_original>
